<compile_context>
chip_gen: v7x
topology: tpu7x:2x2x1
jax: 0.10.0
libtpu: 0.0.40
codegen_flags: <defaults>
</compile_context>

<pallas_src>
import functools

import jax
import jax.numpy as jnp
from jax.experimental import pallas as pl
from jax.experimental.pallas import tpu as pltpu


def _round_up(a: int, b: int) -> int:
    return ((a + b - 1) // b) * b


def _round_down(a: int, b: int) -> int:
    return (a // b) * b


def _inner_product_kernel(x_ref, yt_ref, o_ref, *, act: bool, approx_act: bool):
    # x_ref: (tm, D) tile of x, yt_ref: (D, tn) tile of y.T, o_ref: (tm, tn).
    logits = jnp.dot(x_ref[...], yt_ref[...], preferred_element_type=jnp.float32)
    if act:
        if approx_act:
            # EUP exp + approx EUP reciprocal: ~2x transcendental throughput.
            # Only used when the output is reduced precision (bf16/f16), where
            # the approximation error is far below the output quantization.
            logits = pl.reciprocal(1.0 + jnp.exp(-logits), approx=True)
        else:
            logits = jax.nn.sigmoid(logits)
    o_ref[...] = logits.astype(o_ref.dtype)


def _block_vmem_bytes(rows: int, cols: int, itemsize: int) -> int:
    # Approximate VMEM footprint of a (rows, cols) block: sublane pad to 8,
    # lane pad to 128.
    return _round_up(max(rows, 1), 8) * _round_up(max(cols, 1), 128) * itemsize


def _select_tiles(M, N, D, in_bytes, out_bytes, m_align, tm_cap, tn_cap):
    """Pick large lane-dense tiles under a v7x-safe VMEM budget.

    Blocks never exceed the array dims, so no wrapper padding is needed;
    when a tile is smaller than its dim it is kept aligned (m_align / 128)
    and the last grid step is a partial (masked) block.
    """
    tm = min(tm_cap, M)
    if tm < M:
        tm = max(m_align, _round_down(tm, m_align))
    tn = min(tn_cap, N)
    if tn < N:
        tn = max(128, _round_down(tn, 128))

    budget = 36 << 20  # leaves >= 8 MiB scratch headroom under the 48 MiB cap

    def needed(tm_, tn_):
        x_blk = _block_vmem_bytes(tm_, D, in_bytes)       # lane-padded D -> 128
        y_blk = _block_vmem_bytes(D, tn_, in_bytes)       # lane-dense (D, tn)
        o_blk = _block_vmem_bytes(tm_, tn_, out_bytes)
        acc = _block_vmem_bytes(tm_, tn_, 4)              # f32 logits intermediate
        return 2 * (x_blk + y_blk + o_blk) + acc          # double-buffered in/out

    while needed(tm, tn) > budget and tn > 128:
        tn = max(128, _round_down(tn // 2, 128))
    while needed(tm, tn) > budget and tm > m_align:
        tm = max(m_align, _round_down(tm // 2, m_align))
    return tm, tn, needed(tm, tn)


def inner_product_decoder(x, y, act: bool = True, *, out_dtype=None,
                          tm: int | None = None, tn: int | None = None):
    """Pallas implementation of InnerProductDecoder.forward(x, y).

    out_dtype: defaults to PyTorch promotion (f32@f32->f32, bf16@bf16->bf16).
        Passing jnp.bfloat16 with f32 inputs is an explicit fast path that
        halves HBM writeback (the dominant cost) when downstream tolerates
        bf16 logits/probabilities.
    tm, tn: optional tile-size caps (auto-selected, VMEM-budget enforced).
    """
    M, D = x.shape
    N, D2 = y.shape
    assert D == D2, "x and y must share the feature dimension"

    if out_dtype is None:
        out_dtype = jnp.promote_types(x.dtype, y.dtype)
    out_dtype = jnp.dtype(out_dtype)

    x_bytes = jnp.dtype(x.dtype).itemsize
    y_bytes = jnp.dtype(y.dtype).itemsize
    in_bytes = max(x_bytes, y_bytes)
    out_bytes = out_dtype.itemsize

    # Sublane alignment for any sub-32-bit operand/output block (bf16 -> 16,
    # int8/fp8 -> 32).  Only applies when the tile is smaller than M (full-dim
    # blocks are always legal).
    min_itemsize = min(x_bytes, y_bytes, out_bytes)
    m_align = {1: 32, 2: 16}.get(min_itemsize, 8)

    tm_cap = 1024 if tm is None else max(1, int(tm))
    tn_cap = 2048 if tn is None else max(1, int(tn))
    tm, tn, needed_bytes = _select_tiles(M, N, D, in_bytes, out_bytes,
                                         m_align, tm_cap, tn_cap)

    # Lane-dense, contiguous-burst RHS: (D, N) instead of strided (N, D) rows.
    y_t = jnp.transpose(y)

    n_m = pl.cdiv(M, tm)   # inner axis: x streamed
    n_n = pl.cdiv(N, tn)   # outer axis: yT reused across the inner loop

    approx_act = bool(act) and out_bytes < 4
    kernel = functools.partial(_inner_product_kernel, act=bool(act),
                               approx_act=approx_act)

    # Raise the scoped-VMEM limit for big tiles, but stay well under v7x's
    # 64 MiB physical VMEM so Mosaic keeps internal scratch headroom.
    vmem_limit = int(min(max(needed_bytes + (8 << 20), 32 << 20), 48 << 20))

    cost = pl.CostEstimate(
        flops=2 * M * N * D,
        transcendentals=M * N if act else 0,
        # x is re-read once per outer (N-tile) step; yT read once; out written once.
        bytes_accessed=M * D * x_bytes * n_n + N * D * y_bytes + M * N * out_bytes,
    )

    out = pl.pallas_call(
        kernel,
        out_shape=jax.ShapeDtypeStruct((M, N), out_dtype),
        grid_spec=pltpu.PrefetchScalarGridSpec(
            num_scalar_prefetch=0,
            # Outer axis = N tiles (larger tile -> fewer outer steps -> less
            # refetch of the streamed x operand); inner axis = M tiles.
            grid=(n_n, n_m),
            in_specs=[
                pl.BlockSpec((tm, D), lambda j, i: (i, 0)),  # x: streamed (inner)
                pl.BlockSpec((D, tn), lambda j, i: (0, j)),  # yT: constant across inner
            ],
            out_specs=pl.BlockSpec((tm, tn), lambda j, i: (i, j)),
        ),
        compiler_params=pltpu.CompilerParams(
            # Both axes independent; on v7x the compiler shards across the 2 TCs.
            dimension_semantics=("parallel", "parallel"),
            vmem_limit_bytes=vmem_limit,
        ),
        cost_estimate=cost,
    )(x, y_t)
    return out


def _reference(x, y, act=True):
    out = jnp.dot(x.astype(jnp.float32), y.astype(jnp.float32).T)
    if act:
        out = jax.nn.sigmoid(out)
    return out


if __name__ == "__main__":
    key = jax.random.PRNGKey(0)
    kx, ky, kx2, ky2 = jax.random.split(key, 4)

    # Small shapes: M=128 "nodes" in x, N=128 "nodes" in y, hidden=32.
    M, N, D = 128, 128, 32
    x = jax.random.normal(kx, (M, D), dtype=jnp.float32)
    y = jax.random.normal(ky, (N, D), dtype=jnp.float32)

    out = jax.block_until_ready(inner_product_decoder(x, y, act=True))
    ref = _reference(x, y, act=True)
    assert out.shape == (M, N)
    assert jnp.allclose(out, ref, atol=1e-5, rtol=1e-5), "mismatch vs reference"

    # No-activation path.
    out_lin = jax.block_until_ready(inner_product_decoder(x, y, act=False))
    assert jnp.allclose(out_lin, _reference(x, y, act=False), atol=1e-4, rtol=1e-4)

    # Ragged (non-128-multiple) shapes: full-dim blocks, no wrapper pad/slice.
    M2, N2 = 200, 300
    x2 = jax.random.normal(kx2, (M2, D), dtype=jnp.float32)
    y2 = jax.random.normal(ky2, (N2, D), dtype=jnp.float32)
    out2 = jax.block_until_ready(inner_product_decoder(x2, y2, act=True))
    assert out2.shape == (M2, N2)
    assert jnp.allclose(out2, _reference(x2, y2, act=True), atol=1e-5, rtol=1e-5)

    # Same ragged shapes with forced small tiles -> multi-step grid with
    # partial (masked) edge blocks; still no pad/slice pass over the output.
    out2b = jax.block_until_ready(
        inner_product_decoder(x2, y2, act=True, tm=128, tn=128))
    assert out2b.shape == (M2, N2)
    assert jnp.allclose(out2b, _reference(x2, y2, act=True), atol=1e-5, rtol=1e-5)

    # bf16 inputs -> bf16 output (native MXU dtype, halved writeback,
    # approx-EUP sigmoid).
    out_bf16 = jax.block_until_ready(
        inner_product_decoder(x.astype(jnp.bfloat16), y.astype(jnp.bfloat16)))
    assert out_bf16.dtype == jnp.bfloat16
    assert jnp.allclose(out_bf16.astype(jnp.float32), ref, atol=2e-2, rtol=2e-2)

    # Explicit bf16-output fast path for f32 inputs (writeback-bound lever).
    out_fast = jax.block_until_ready(
        inner_product_decoder(x, y, act=True, out_dtype=jnp.bfloat16))
    assert out_fast.dtype == jnp.bfloat16
    assert jnp.allclose(out_fast.astype(jnp.float32), ref, atol=2e-2, rtol=2e-2)

    print("KERNEL_OK")
</pallas_src>

<mosaic_0001>
module attributes {stable_mosaic.version = 11 : i64} {
  func.func @_inner_product_kernel(%arg0: i32, %arg1: i32, %arg2: memref<128x32xf32, #tpu.memory_space<vmem>>, %arg3: memref<32x128xf32, #tpu.memory_space<vmem>>, %arg4: memref<128x128xf32, #tpu.memory_space<vmem>>) attributes {dimension_semantics = [#tpu.dimension_semantics<parallel>, #tpu.dimension_semantics<parallel>], iteration_bounds = array<i64: 1, 1>, scalar_prefetch = 0 : i64, scratch_operands = 0 : i64, tpu.core_type = #tpu.core_type<tc>, window_params = [{transform_indices = @transform_0, window_bounds = array<i64: 128, 32>}, {transform_indices = @transform_1, window_bounds = array<i64: 32, 128>}, {transform_indices = @transform_2, window_bounds = array<i64: 128, 128>}]} {
    %c0 = arith.constant 0 : index
    %c0_0 = arith.constant 0 : index
    %0 = vector.load %arg2[%c0, %c0_0] : memref<128x32xf32, #tpu.memory_space<vmem>>, vector<128x32xf32>
    %c0_1 = arith.constant 0 : index
    %c0_2 = arith.constant 0 : index
    %1 = vector.load %arg3[%c0_1, %c0_2] : memref<32x128xf32, #tpu.memory_space<vmem>>, vector<32x128xf32>
    %cst = arith.constant dense<0.000000e+00> : vector<128x128xf32>
    %2 = tpu.matmul %0, %1, %cst {dimension_numbers = #tpu.dot_dimension_numbers<[1], [0], [0], [1], [0, 0, 1, 1], [], []>} : vector<128x32xf32>, vector<32x128xf32>, vector<128x128xf32> -> vector<128x128xf32>
    %3 = arith.negf %2 : vector<128x128xf32>
    %4 = math.exp %3 : vector<128x128xf32>
    %cst_3 = arith.constant 1.000000e+00 : f32
    %5 = vector.broadcast %cst_3 : f32 to vector<128x128xf32>
    %6 = arith.addf %5, %4 : vector<128x128xf32>
    %7 = arith.divf %5, %6 : vector<128x128xf32>
    %c0_4 = arith.constant 0 : index
    %c0_5 = arith.constant 0 : index
    %8 = vector.load %arg4[%c0_4, %c0_5] : memref<128x128xf32, #tpu.memory_space<vmem>>, vector<128x128xf32>
    tpu.vector_store %arg4[%c0_4, %c0_5], %7 {strides = array<i32>} : memref<128x128xf32, #tpu.memory_space<vmem>>, vector<128x128xf32>,
    return
  }
  func.func @transform_0(%arg0: i32, %arg1: i32) -> (i32, i32) {
    %c0_i32 = arith.constant 0 : i32
    %c0_i32_0 = arith.constant 0 : i32
    return %arg1, %c0_i32 : i32, i32
  }
  func.func @transform_1(%arg0: i32, %arg1: i32) -> (i32, i32) {
    %c0_i32 = arith.constant 0 : i32
    %c0_i32_0 = arith.constant 0 : i32
    return %c0_i32, %arg0 : i32, i32
  }
  func.func @transform_2(%arg0: i32, %arg1: i32) -> (i32, i32) {
    %c0_i32 = arith.constant 0 : i32
    return %arg1, %arg0 : i32, i32
  }
}

</mosaic_0001>

<llo_original>
// kernel: tpu_custom_call.1
$region0: #{tpu_custom_call.1}
  #allocation0 [shape = 'u32[]', space=smem, size = 0x4, offset = 0x4, fixed_abs, tag = 'smem constant byte address 0x4 - core index']
  #allocation1 [shape = 'u32[144,128]{1,0:T(1,128)}', space=vmem, size = 0x12000, scoped, tag = 'internal scratch']
  %s0 = inlined_call_operand.vmem [shape: f32[128,32], index: 0, kind: input, shape index: {}]
  %s1 = inlined_call_operand.vmem [shape: f32[32,128], index: 1, kind: input, shape index: {}]
  %s2 = inlined_call_operand.hbm [shape: f32[128,128], index: 2, kind: output, shape index: {}]
  %s3 = sld [smem:[#allocation0]]
  $region18: #{tpu_custom_call.1} parent=0
    _
  %s5 = ssub.s32 1, %s3
  %s6 = scalar_select 0, %s5, %s3
  $region1: #{tpu_custom_call.1} parent=0
    #allocation2 [shape = 'u8[65536]{0}', space=vmem, size = 0x10000, scoped, tag = 'output window, operand 0, single buffered']
    #allocation3 [shape = 's32[1]{0}', space=sflag, size = 0x4, scoped, tag = 'scoped memory for tpu_custom_call.1']
    %7 = vsyncpa [#allocation3], 0
    // Predicated region
    $region2: #{tpu_custom_call.1} parent=1 // pred_check
      _
    $region3: #{tpu_custom_call.1} parent=1 // pred_check_branch
      %9 = sbr.rel (0) target = $region5
    $region4: #{tpu_custom_call.1} parent=1 // pred_region
      _
    $region5: #{tpu_custom_call.1} parent=1 // pred_fallthru
      _
    // Predicated region
    $region6: #{tpu_custom_call.1} parent=1 // pred_check
      _
    $region7: #{tpu_custom_call.1} parent=1 // pred_check_branch
      %11 = sbr.rel (0) target = $region9
    $region8: #{tpu_custom_call.1} parent=1 // pred_region
      _
    $region9: #{tpu_custom_call.1} parent=1 // pred_fallthru
      _
    %v12 = vld [vmem:[%s0] sm:$0xff]
    %v13 = vld [vmem:[%s0 + $0x8] sm:$0xff]
    %v14 = vld [vmem:[%s0 + $0x10] sm:$0xff]
    %v15 = vld [vmem:[%s0 + $0x18] sm:$0xff]
    %v16 = vld [vmem:[%s0 + $0x20] sm:$0xff]
    %v17 = vld [vmem:[%s0 + $0x28] sm:$0xff]
    %v18 = vld [vmem:[%s0 + $0x30] sm:$0xff]
    %v19 = vld [vmem:[%s0 + $0x38] sm:$0xff]
    %v20 = vld [vmem:[%s0 + $0x40] sm:$0xff]
    %v21 = vld [vmem:[%s0 + $0x48] sm:$0xff]
    %v22 = vld [vmem:[%s0 + $0x50] sm:$0xff]
    %v23 = vld [vmem:[%s0 + $0x58] sm:$0xff]
    %v24 = vld [vmem:[%s0 + $0x60] sm:$0xff]
    %v25 = vld [vmem:[%s0 + $0x68] sm:$0xff]
    %v26 = vld [vmem:[%s0 + $0x70] sm:$0xff]
    %v27 = vld [vmem:[%s0 + $0x78] sm:$0xff]
    %v28 = vld [vmem:[%s1] sm:$0xff]
    %v29 = vld [vmem:[%s1 + $0x8] sm:$0xff]
    %v30 = vld [vmem:[%s1 + $0x10] sm:$0xff]
    %v31 = vld [vmem:[%s1 + $0x18] sm:$0xff]
    %vm32 = vcmask 261120
    %v34 = vsel %vm32, %v12, 0
    %v37 = vsel %vm32, %v13, 0
    %v40 = vsel %vm32, %v14, 0
    %v43 = vsel %vm32, %v15, 0
    %v46 = vsel %vm32, %v16, 0
    %v49 = vsel %vm32, %v17, 0
    %v52 = vsel %vm32, %v18, 0
    %v55 = vsel %vm32, %v19, 0
    %v58 = vsel %vm32, %v20, 0
    %v61 = vsel %vm32, %v21, 0
    %v64 = vsel %vm32, %v22, 0
    %v67 = vsel %vm32, %v23, 0
    %v70 = vsel %vm32, %v24, 0
    %v73 = vsel %vm32, %v25, 0
    %v76 = vsel %vm32, %v26, 0
    %v79 = vsel %vm32, %v27, 0
    %81 = vmatprep.subr.mxu0 0.0
    %82 = vmatpush1.msra.mxu0 %v28
    %83 = vmatprep.subr.mxu0 0.0
    %84 = vmatpush1.msra.mxu0 %v29
    %85 = vmatprep.subr.mxu0 0.0
    %86 = vmatpush1.msra.mxu0 %v30
    %87 = vmatprep.subr.mxu0 0.0
    %88 = vmatpush1.msra.mxu0 %v31
    %89 = vmatprep.subr.mxu0 0.0
    %90 = vmatpush1.msra.mxu0 0.0
    %91 = vmatprep.subr.mxu0 0.0
    %92 = vmatpush1.msra.mxu0 0.0
    %93 = vmatprep.subr.mxu0 0.0
    %94 = vmatpush1.msra.mxu0 0.0
    %95 = vmatprep.subr.mxu0 0.0
    %96 = vmatpush1.msra.mxu0 0.0
    %97 = vmatprep.subr.mxu0 0.0
    %98 = vmatpush1.msra.mxu0 0.0
    %99 = vmatprep.subr.mxu0 0.0
    %100 = vmatpush1.msra.mxu0 0.0
    %101 = vmatprep.subr.mxu0 0.0
    %102 = vmatpush1.msra.mxu0 0.0
    %103 = vmatprep.subr.mxu0 0.0
    %104 = vmatpush1.msra.mxu0 0.0
    %105 = vmatprep.subr.mxu0 0.0
    %106 = vmatpush1.msra.mxu0 0.0
    %107 = vmatprep.subr.mxu0 0.0
    %108 = vmatpush1.msra.mxu0 0.0
    %109 = vmatprep.subr.mxu0 0.0
    %110 = vmatpush1.msra.mxu0 0.0
    %111 = vmatprep.subr.mxu0 0.0
    %112 = vmatpush1.msra.mxu0 0.0
    %113 = vmatprep.subr.mxu0 0.0
    %114 = vmatpush1.msra.mxu0 0.0
    %115 = vmatprep.subr.mxu0 0.0
    %116 = vmatpush1.msra.mxu0 0.0
    %117 = vmatprep.subr.mxu0 0.0
    %118 = vmatpush1.msra.mxu0 0.0
    %119 = vmatprep.subr.mxu0 0.0
    %120 = vmatpush1.msra.mxu0 0.0
    %121 = vmatprep.subr.mxu0 0.0
    %122 = vmatpush1.msra.mxu0 0.0
    %123 = vmatprep.subr.mxu0 0.0
    %124 = vmatpush1.msra.mxu0 0.0
    %125 = vmatprep.subr.mxu0 0.0
    %126 = vmatpush1.msra.mxu0 0.0
    %127 = vmatprep.subr.mxu0 0.0
    %128 = vmatpush1.msra.mxu0 0.0
    %129 = vmatprep.subr.mxu0 0.0
    %130 = vmatpush1.msra.mxu0 0.0
    %131 = vmatprep.subr.mxu0 0.0
    %132 = vmatpush1.msra.mxu0 0.0
    %133 = vmatprep.subr.mxu0 0.0
    %134 = vmatpush1.msra.mxu0 0.0
    %135 = vmatprep.subr.mxu0 0.0
    %136 = vmatpush1.msra.mxu0 0.0
    %137 = vmatprep.subr.mxu0 0.0
    %138 = vmatpush1.msra.mxu0 0.0
    %139 = vmatprep.subr.mxu0 0.0
    %140 = vmatpush1.msra.mxu0 0.0
    %141 = vmatprep.subr.mxu0 0.0
    %142 = vmatpush1.msra.mxu0 0.0
    %143 = vmatprep.subr.mxu0 0.0
    %144 = vmatpush1.msra.mxu0 0.0
    %145 = vmatprep.mubr.f32.mxu0 0.0
    %146 = vmatmul.mubr.f32.gmra.mrb[0].mxu0 %v34
    %v147 = vpop.f32.mrb[0].mxu0
    %v148 = vadd.f32 0.0, %v147
    %v149 = vpop.f32.mrb[0].mxu0
    %150 = vmatprep.mubr.f32.mxu0 0.0
    %151 = vmatmul.mubr.f32.gmra.mrb[0].mxu0 %v37
    %v152 = vpop.f32.mrb[0].mxu0
    %v153 = vadd.f32 0.0, %v152
    %v154 = vpop.f32.mrb[0].mxu0
    %155 = vmatprep.mubr.f32.mxu0 0.0
    %156 = vmatmul.mubr.f32.gmra.mrb[0].mxu0 %v40
    %v157 = vpop.f32.mrb[0].mxu0
    %v158 = vadd.f32 0.0, %v157
    %v159 = vpop.f32.mrb[0].mxu0
    %160 = vmatprep.mubr.f32.mxu0 0.0
    %161 = vmatmul.mubr.f32.gmra.mrb[0].mxu0 %v43
    %v162 = vpop.f32.mrb[0].mxu0
    %v163 = vadd.f32 0.0, %v162
    %v164 = vpop.f32.mrb[0].mxu0
    %165 = vmatprep.mubr.f32.mxu0 0.0
    %166 = vmatmul.mubr.f32.gmra.mrb[0].mxu0 %v46
    %v167 = vpop.f32.mrb[0].mxu0
    %v168 = vadd.f32 0.0, %v167
    %v169 = vpop.f32.mrb[0].mxu0
    %170 = vmatprep.mubr.f32.mxu0 0.0
    %171 = vmatmul.mubr.f32.gmra.mrb[0].mxu0 %v49
    %v172 = vpop.f32.mrb[0].mxu0
    %v173 = vadd.f32 0.0, %v172
    %v174 = vpop.f32.mrb[0].mxu0
    %175 = vmatprep.mubr.f32.mxu0 0.0
    %176 = vmatmul.mubr.f32.gmra.mrb[0].mxu0 %v52
    %v177 = vpop.f32.mrb[0].mxu0
    %v178 = vadd.f32 0.0, %v177
    %v179 = vpop.f32.mrb[0].mxu0
    %180 = vmatprep.mubr.f32.mxu0 0.0
    %181 = vmatmul.mubr.f32.gmra.mrb[0].mxu0 %v55
    %v182 = vpop.f32.mrb[0].mxu0
    %v183 = vadd.f32 0.0, %v182
    %v184 = vpop.f32.mrb[0].mxu0
    %185 = vmatprep.mubr.f32.mxu0 0.0
    %186 = vmatmul.mubr.f32.gmra.mrb[0].mxu0 %v58
    %v187 = vpop.f32.mrb[0].mxu0
    %v188 = vadd.f32 0.0, %v187
    %v189 = vpop.f32.mrb[0].mxu0
    %190 = vmatprep.mubr.f32.mxu0 0.0
    %191 = vmatmul.mubr.f32.gmra.mrb[0].mxu0 %v61
    %v192 = vpop.f32.mrb[0].mxu0
    %v193 = vadd.f32 0.0, %v192
    %v194 = vpop.f32.mrb[0].mxu0
    %195 = vmatprep.mubr.f32.mxu0 0.0
    %196 = vmatmul.mubr.f32.gmra.mrb[0].mxu0 %v64
    %v197 = vpop.f32.mrb[0].mxu0
    %v198 = vadd.f32 0.0, %v197
    %v199 = vpop.f32.mrb[0].mxu0
    %200 = vmatprep.mubr.f32.mxu0 0.0
    %201 = vmatmul.mubr.f32.gmra.mrb[0].mxu0 %v67
    %v202 = vpop.f32.mrb[0].mxu0
    %v203 = vadd.f32 0.0, %v202
    %v204 = vpop.f32.mrb[0].mxu0
    %205 = vmatprep.mubr.f32.mxu0 0.0
    %206 = vmatmul.mubr.f32.gmra.mrb[0].mxu0 %v70
    %v207 = vpop.f32.mrb[0].mxu0
    %v208 = vadd.f32 0.0, %v207
    %v209 = vpop.f32.mrb[0].mxu0
    %210 = vmatprep.mubr.f32.mxu0 0.0
    %211 = vmatmul.mubr.f32.gmra.mrb[0].mxu0 %v73
    %v212 = vpop.f32.mrb[0].mxu0
    %v213 = vadd.f32 0.0, %v212
    %v214 = vpop.f32.mrb[0].mxu0
    %215 = vmatprep.mubr.f32.mxu0 0.0
    %216 = vmatmul.mubr.f32.gmra.mrb[0].mxu0 %v76
    %v217 = vpop.f32.mrb[0].mxu0
    %v218 = vadd.f32 0.0, %v217
    %v219 = vpop.f32.mrb[0].mxu0
    %220 = vmatprep.mubr.f32.mxu0 0.0
    %221 = vmatmul.mubr.f32.gmra.mrb[0].mxu0 %v79
    %v222 = vpop.f32.mrb[0].mxu0
    %v223 = vadd.f32 0.0, %v222
    %v224 = vpop.f32.mrb[0].mxu0
    %225 = vdwg.mxu0
    %v226 = vxor.u32 %v148, 2147483648
    %v227 = vxor.u32 %v153, 2147483648
    %v228 = vxor.u32 %v158, 2147483648
    %v229 = vxor.u32 %v163, 2147483648
    %v230 = vxor.u32 %v168, 2147483648
    %v231 = vxor.u32 %v173, 2147483648
    %v232 = vxor.u32 %v178, 2147483648
    %v233 = vxor.u32 %v183, 2147483648
    %v234 = vxor.u32 %v188, 2147483648
    %v235 = vxor.u32 %v193, 2147483648
    %v236 = vxor.u32 %v198, 2147483648
    %v237 = vxor.u32 %v203, 2147483648
    %v238 = vxor.u32 %v208, 2147483648
    %v239 = vxor.u32 %v213, 2147483648
    %v240 = vxor.u32 %v218, 2147483648
    %v241 = vxor.u32 %v223, 2147483648
    %v242 = vmul.f32 %v226, 1.442695
    %v243 = vpow.pop %v242
    %v244 = vmul.f32 %v227, 1.442695
    %v245 = vpow.pop %v244
    %v246 = vmul.f32 %v228, 1.442695
    %v247 = vpow.pop %v246
    %v248 = vmul.f32 %v229, 1.442695
    %v249 = vpow.pop %v248
    %v250 = vmul.f32 %v230, 1.442695
    %v251 = vpow.pop %v250
    %v252 = vmul.f32 %v231, 1.442695
    %v253 = vpow.pop %v252
    %v254 = vmul.f32 %v232, 1.442695
    %v255 = vpow.pop %v254
    %v256 = vmul.f32 %v233, 1.442695
    %v257 = vpow.pop %v256
    %v258 = vmul.f32 %v234, 1.442695
    %v259 = vpow.pop %v258
    %v260 = vmul.f32 %v235, 1.442695
    %v261 = vpow.pop %v260
    %v262 = vmul.f32 %v236, 1.442695
    %v263 = vpow.pop %v262
    %v264 = vmul.f32 %v237, 1.442695
    %v265 = vpow.pop %v264
    %v266 = vmul.f32 %v238, 1.442695
    %v267 = vpow.pop %v266
    %v268 = vmul.f32 %v239, 1.442695
    %v269 = vpow.pop %v268
    %v270 = vmul.f32 %v240, 1.442695
    %v271 = vpow.pop %v270
    %v272 = vmul.f32 %v241, 1.442695
    %v273 = vpow.pop %v272
    %v274 = vadd.f32 %v243, 1.0
    %v275 = vadd.f32 %v245, 1.0
    %v276 = vadd.f32 %v247, 1.0
    %v277 = vadd.f32 %v249, 1.0
    %v278 = vadd.f32 %v251, 1.0
    %v279 = vadd.f32 %v253, 1.0
    %v280 = vadd.f32 %v255, 1.0
    %v281 = vadd.f32 %v257, 1.0
    %v282 = vadd.f32 %v259, 1.0
    %v283 = vadd.f32 %v261, 1.0
    %v284 = vadd.f32 %v263, 1.0
    %v285 = vadd.f32 %v265, 1.0
    %v286 = vadd.f32 %v267, 1.0
    %v287 = vadd.f32 %v269, 1.0
    %v288 = vadd.f32 %v271, 1.0
    %v289 = vadd.f32 %v273, 1.0
    %v290 = vrcp.pop %v274
    %v291 = vmul.f32 1.0, %v290
    %v292 = vrcp.pop %v275
    %v293 = vmul.f32 1.0, %v292
    %v294 = vrcp.pop %v276
    %v295 = vmul.f32 1.0, %v294
    %v296 = vrcp.pop %v277
    %v297 = vmul.f32 1.0, %v296
    %v298 = vrcp.pop %v278
    %v299 = vmul.f32 1.0, %v298
    %v300 = vrcp.pop %v279
    %v301 = vmul.f32 1.0, %v300
    %v302 = vrcp.pop %v280
    %v303 = vmul.f32 1.0, %v302
    %v304 = vrcp.pop %v281
    %v305 = vmul.f32 1.0, %v304
    %v306 = vrcp.pop %v282
    %v307 = vmul.f32 1.0, %v306
    %v308 = vrcp.pop %v283
    %v309 = vmul.f32 1.0, %v308
    %v310 = vrcp.pop %v284
    %v311 = vmul.f32 1.0, %v310
    %v312 = vrcp.pop %v285
    %v313 = vmul.f32 1.0, %v312
    %v314 = vrcp.pop %v286
    %v315 = vmul.f32 1.0, %v314
    %v316 = vrcp.pop %v287
    %v317 = vmul.f32 1.0, %v316
    %v318 = vrcp.pop %v288
    %v319 = vmul.f32 1.0, %v318
    %v320 = vrcp.pop %v289
    %v321 = vmul.f32 1.0, %v320
    %322 = vst [vmem:[#allocation2] sm:$0xff] %v291
    %323 = vst [vmem:[#allocation2 + $0x8] sm:$0xff] %v293
    %324 = vst [vmem:[#allocation2 + $0x10] sm:$0xff] %v295
    %325 = vst [vmem:[#allocation2 + $0x18] sm:$0xff] %v297
    %326 = vst [vmem:[#allocation2 + $0x20] sm:$0xff] %v299
    %327 = vst [vmem:[#allocation2 + $0x28] sm:$0xff] %v301
    %328 = vst [vmem:[#allocation2 + $0x30] sm:$0xff] %v303
    %329 = vst [vmem:[#allocation2 + $0x38] sm:$0xff] %v305
    %330 = vst [vmem:[#allocation2 + $0x40] sm:$0xff] %v307
    %331 = vst [vmem:[#allocation2 + $0x48] sm:$0xff] %v309
    %332 = vst [vmem:[#allocation2 + $0x50] sm:$0xff] %v311
    %333 = vst [vmem:[#allocation2 + $0x58] sm:$0xff] %v313
    %334 = vst [vmem:[#allocation2 + $0x60] sm:$0xff] %v315
    %335 = vst [vmem:[#allocation2 + $0x68] sm:$0xff] %v317
    %336 = vst [vmem:[#allocation2 + $0x70] sm:$0xff] %v319
    %337 = vst [vmem:[#allocation2 + $0x78] sm:$0xff] %v321
    // Predicated region
    $region10: #{tpu_custom_call.1} parent=1 // pred_check
      _
    $region11: #{tpu_custom_call.1} parent=1 // pred_check_branch
      %339 = sbr.rel (0) target = $region13
    $region12: #{tpu_custom_call.1} parent=1 // pred_region
      %s341 = ssub.s32 2048, 2048
      %342 = vsyncadd [#allocation3], %s341
      %s343 = sshll.u32 [#allocation2], 4
      %s344 = int_to_ptr.vmem [resolvable:$true] %s343
      %349 = dma.vmem_to_hbm [thread:$0]  %s344, 2048, %s2, [#allocation3], 128, 128, 8
    $region13: #{tpu_custom_call.1} parent=1 // pred_fallthru
      _
    // Predicated region
    $region14: #{tpu_custom_call.1} parent=1 // pred_check
      _
    $region15: #{tpu_custom_call.1} parent=1 // pred_check_branch
      %351 = sbr.rel (0) target = $region17
    $region16: #{tpu_custom_call.1} parent=1 // pred_region
      %352 = dma.done [#allocation3], 2048
    $region17: #{tpu_custom_call.1} parent=1 // pred_fallthru
      _
    %353 = vsyncpa [#allocation3], 1

</llo_original>
